<compile_context>
chip_gen: v6e
topology: v6e:2x2x1
jax: 0.10.0
libtpu: 0.0.40
codegen_flags: <defaults>
</compile_context>

<pallas_src>
import jax
import jax.numpy as jnp
from jax.experimental import pallas as pl
from jax.experimental.pallas import tpu as pltpu


def _nll_partial_sum_kernel(pred_ref, tgt_ref, out_ref):
    """Accumulates per-lane partial sums of pred[i, target[i]] for one row split.

    pred_ref: (TN, L) log-probs; L = K*C (K logical rows folded into the lanes).
    tgt_ref:  (TN, K) flat lane index (j*C + target) per folded sub-row
              (int8 when L <= 128, else int32).
    out_ref:  (8, L) f32 resident block; row 0 carries the running per-lane sums.
    """
    step = pl.program_id(1)

    @pl.when(step == 0)
    def _init():
        out_ref[...] = jnp.zeros_like(out_ref)

    pred = pred_ref[...]                                  # keep wire dtype (f32 / bf16)
    tgt = tgt_ref[...].astype(jnp.int32)                  # (TN, K)
    tn, lanes = pred.shape
    k = tgt.shape[1]

    col = jax.lax.broadcasted_iota(jnp.int32, (tn, lanes), 1)
    mask = col == tgt[:, 0:1]
    for j in range(1, k):                                 # small static unroll (k <= 8)
        mask = jnp.logical_or(mask, col == tgt[:, j:j + 1])

    # NaN-safe gather: select (not multiply) so off-target -inf log-probs drop out.
    sel = jnp.where(mask, pred, 0).astype(jnp.float32)    # (TN, L) f32

    # Row-only reduction (vreg adds + one 8->1 sublane fold); keep per-lane
    # partials so there is no full cross-lane reduce or scalar RMW per step.
    out_ref[0:1, :] += jnp.sum(sel, axis=0, keepdims=True)


def _round_up(x, m):
    return -(-x // m) * m


def _num_tensorcores():
    """2 for megacore-style chips (2 TCs behind one device), else 1."""
    try:
        kind = jax.devices()[0].device_kind.lower()
    except Exception:
        return 1
    return 2 if any(t in kind for t in ("v4", "v5p", "v7", "7x")) else 1


def nll_loss_pallas(pred, target, trans_feat=None):
    """Equivalent of get_loss().forward(pred, target, trans_feat)."""
    del trans_feat  # unused by the reference module
    # TODO(synk): only default F.nll_loss semantics (no ignore_index / class weights).
    n, c = pred.shape
    tgt = target.astype(jnp.int32)

    # Fold k logical rows into the lane dimension (pure reshape -> free in HBM).
    k = max(1, min(128 // c, 8)) if c <= 128 else 1
    lanes = k * c

    num_splits = _num_tensorcores()            # one resident partial block per TensorCore
    nf = -(-n // k)                            # folded row count

    # Row-tile size: as big as a ~16 MiB double-buffered input budget allows
    # (the old tn=1024 was per-step-overhead bound).  Budgeted against the
    # lane-padded VMEM footprint so it also fits v7x (64 MiB phys) and v5e.
    itemsize = jnp.dtype(pred.dtype).itemsize
    tgt_itemsize = 1 if lanes <= 128 else 4
    pred_row_bytes = _round_up(lanes, 128) * itemsize
    tgt_row_bytes = 128 * tgt_itemsize
    vmem_input_budget = 16 * 1024 * 1024
    tn_budget = max(8, vmem_input_budget // (2 * (pred_row_bytes + tgt_row_bytes)))
    tn = min(8192, tn_budget, _round_up(-(-nf // num_splits), 8))
    tn = max(8, (tn // 8) * 8)

    steps = -(-nf // (tn * num_splits))
    nf_pad = steps * tn * num_splits
    n_pad = nf_pad * k

    if n_pad > n:
        # Padded rows carry pred == 0 and target == 0 -> contribute exactly 0.
        pred = jnp.pad(pred, ((0, n_pad - n), (0, 0)))
        tgt = jnp.pad(tgt, (0, n_pad - n))

    # Flat lane index of each row's target class inside its fold group: j*C + t.
    j_idx = jnp.arange(n_pad, dtype=jnp.int32) % k
    tgt_flat = j_idx * jnp.int32(c) + tgt
    tgt_dtype = jnp.int8 if lanes <= 128 else jnp.int32   # flat idx <= 127 when L <= 128
    tgt_f = tgt_flat.astype(tgt_dtype).reshape(nf_pad, k)
    pred_f = pred.reshape(nf_pad, lanes)                  # keep wire dtype (bf16 stays bf16)

    out = pl.pallas_call(
        _nll_partial_sum_kernel,
        out_shape=jax.ShapeDtypeStruct((num_splits * 8, lanes), jnp.float32),
        grid=(num_splits, steps),
        in_specs=[
            pl.BlockSpec((tn, lanes), lambda p, s: (p * steps + s, 0)),
            pl.BlockSpec((tn, k), lambda p, s: (p * steps + s, 0)),
        ],
        out_specs=pl.BlockSpec((8, lanes), lambda p, s: (p, 0)),
        compiler_params=pltpu.CompilerParams(
            dimension_semantics=("parallel", "arbitrary"),
            vmem_limit_bytes=32 * 1024 * 1024),
    )(pred_f, tgt_f)

    # out holds per-lane / per-split partial sums; mean over the ORIGINAL n rows.
    return -jnp.sum(out) / jnp.float32(n)


if __name__ == "__main__":
    key = jax.random.PRNGKey(0)
    k1, k2, k3, k4 = jax.random.split(key, 4)

    # Case 1: part-seg-like shape kept small: B=2 clouds x 64 points, 50 part classes.
    N1, C1 = 2 * 64, 50
    pred1 = jax.nn.log_softmax(
        jax.random.normal(k1, (N1, C1), dtype=jnp.float32), axis=-1)
    tgt1 = jax.random.randint(k2, (N1,), 0, C1, dtype=jnp.int32)
    trans_feat = jax.random.normal(key, (2, 64, 64), dtype=jnp.float32)  # unused by the loss
    loss1 = jax.block_until_ready(nll_loss_pallas(pred1, tgt1, trans_feat))
    ref1 = -jnp.mean(pred1[jnp.arange(N1), tgt1])
    assert jnp.allclose(loss1, ref1, atol=1e-5, rtol=1e-5), (loss1, ref1)

    # Case 2: ragged row count with small class count, exercising the k=8 fold,
    # int8 flat targets and the zero-padding path.
    N2, C2 = 70, 16
    pred2 = jax.nn.log_softmax(
        jax.random.normal(k3, (N2, C2), dtype=jnp.float32), axis=-1)
    tgt2 = jax.random.randint(k4, (N2,), 0, C2, dtype=jnp.int32)
    loss2 = jax.block_until_ready(nll_loss_pallas(pred2, tgt2, None))
    ref2 = -jnp.mean(pred2[jnp.arange(N2), tgt2])
    assert jnp.allclose(loss2, ref2, atol=1e-5, rtol=1e-5), (loss2, ref2)

    print("KERNEL_OK")
</pallas_src>

<mosaic_0001>
module attributes {stable_mosaic.version = 11 : i64} {
  func.func @_nll_partial_sum_kernel(%arg0: i32, %arg1: i32, %arg2: memref<64x100xf32, #tpu.memory_space<vmem>>, %arg3: memref<64x2xi8, #tpu.memory_space<vmem>>, %arg4: memref<8x100xf32, #tpu.memory_space<vmem>>) attributes {dimension_semantics = [#tpu.dimension_semantics<parallel>, #tpu.dimension_semantics<arbitrary>], iteration_bounds = array<i64: 1, 1>, scalar_prefetch = 0 : i64, scratch_operands = 0 : i64, tpu.core_type = #tpu.core_type<tc>, window_params = [{transform_indices = @transform_0, window_bounds = array<i64: 64, 100>}, {transform_indices = @transform_1, window_bounds = array<i64: 64, 2>}, {transform_indices = @transform_2, window_bounds = array<i64: 8, 100>}]} {
    %c0_i32 = arith.constant 0 : i32
    %0 = arith.cmpi eq, %arg1, %c0_i32 : i32
    %1 = arith.extui %0 : i1 to i32
    %c0_i32_0 = arith.constant 0 : i32
    %2 = arith.cmpi ne, %1, %c0_i32_0 : i32
    scf.if %2 {
      %cst_9 = arith.constant 0.000000e+00 : f32
      %22 = vector.broadcast %cst_9 : f32 to vector<8x100xf32>
      %c0_10 = arith.constant 0 : index
      %c0_11 = arith.constant 0 : index
      %23 = vector.load %arg4[%c0_10, %c0_11] : memref<8x100xf32, #tpu.memory_space<vmem>>, vector<8x100xf32>
      tpu.vector_store %arg4[%c0_10, %c0_11], %22 {strides = array<i32>} : memref<8x100xf32, #tpu.memory_space<vmem>>, vector<8x100xf32>,
    } else {
    }
    %c0 = arith.constant 0 : index
    %c0_1 = arith.constant 0 : index
    %3 = vector.load %arg2[%c0, %c0_1] : memref<64x100xf32, #tpu.memory_space<vmem>>, vector<64x100xf32>
    %c0_2 = arith.constant 0 : index
    %c0_3 = arith.constant 0 : index
    %4 = vector.load %arg3[%c0_2, %c0_3] : memref<64x2xi8, #tpu.memory_space<vmem>>, vector<64x2xi8>
    %5 = arith.extsi %4 : vector<64x2xi8> to vector<64x2xi32>
    %6 = tpu.iota {dimensions = array<i32: 1>} : vector<64x100xi32>
    %7 = vector.extract_strided_slice %5 {offsets = [0, 0], sizes = [64, 1], strides = [1, 1]} : vector<64x2xi32> to vector<64x1xi32>
    %8 = vector.broadcast %7 : vector<64x1xi32> to vector<64x100xi32>
    %9 = arith.cmpi eq, %6, %8 : vector<64x100xi32>
    %10 = vector.extract_strided_slice %5 {offsets = [0, 1], sizes = [64, 1], strides = [1, 1]} : vector<64x2xi32> to vector<64x1xi32>
    %11 = vector.broadcast %10 : vector<64x1xi32> to vector<64x100xi32>
    %12 = arith.cmpi eq, %6, %11 : vector<64x100xi32>
    %13 = arith.ori %9, %12 : vector<64x100xi1>
    %c0_i32_4 = arith.constant 0 : i32
    %14 = arith.sitofp %c0_i32_4 : i32 to f32
    %15 = vector.broadcast %14 : f32 to vector<64x100xf32>
    %16 = arith.select %13, %3, %15 : vector<64x100xi1>, vector<64x100xf32>
    %c0_5 = arith.constant 0 : index
    %c0_6 = arith.constant 0 : index
    %17 = vector.load %arg4[%c0_5, %c0_6] : memref<8x100xf32, #tpu.memory_space<vmem>>, vector<1x100xf32>
    %cst = arith.constant dense<0.000000e+00> : vector<100xf32>
    %18 = vector.multi_reduction <add>, %16, %cst [0] : vector<64x100xf32> to vector<100xf32>
    %19 = vector.shape_cast %18 : vector<100xf32> to vector<1x100xf32>
    %20 = arith.addf %17, %19 : vector<1x100xf32>
    %c0_7 = arith.constant 0 : index
    %c0_8 = arith.constant 0 : index
    %21 = vector.load %arg4[%c0_7, %c0_8] : memref<8x100xf32, #tpu.memory_space<vmem>>, vector<1x100xf32>
    tpu.vector_store %arg4[%c0_7, %c0_8], %20 {strides = array<i32>} : memref<8x100xf32, #tpu.memory_space<vmem>>, vector<1x100xf32>,
    return
  }
  func.func @transform_0(%arg0: i32, %arg1: i32) -> (i32, i32) {
    %c1_i32 = arith.constant 1 : i32
    %0 = arith.muli %arg0, %c1_i32 : i32
    %1 = arith.addi %0, %arg1 : i32
    %c0_i32 = arith.constant 0 : i32
    %c0_i32_0 = arith.constant 0 : i32
    return %1, %c0_i32 : i32, i32
  }
  func.func @transform_1(%arg0: i32, %arg1: i32) -> (i32, i32) {
    %c1_i32 = arith.constant 1 : i32
    %0 = arith.muli %arg0, %c1_i32 : i32
    %1 = arith.addi %0, %arg1 : i32
    %c0_i32 = arith.constant 0 : i32
    %c0_i32_0 = arith.constant 0 : i32
    return %1, %c0_i32 : i32, i32
  }
  func.func @transform_2(%arg0: i32, %arg1: i32) -> (i32, i32) {
    %c0_i32 = arith.constant 0 : i32
    %c0_i32_0 = arith.constant 0 : i32
    return %arg0, %c0_i32 : i32, i32
  }
}

</mosaic_0001>

<llo_original>
// kernel: tpu_custom_call.1
$region0: #{tpu_custom_call.1}
  #allocation0 [shape = 'u32[]', space=smem, size = 0x4, offset = 0x4, fixed_abs, tag = 'smem constant byte address 0x4 - core index']
  #allocation1 [shape = 'u32[144,128]{1,0:T(1,128)}', space=vmem, size = 0x12000, scoped, tag = 'internal scratch']
  %s0 = inlined_call_operand.hbm [shape: f32[64,100], index: 0, kind: input, shape index: {}]
  %s1 = inlined_call_operand.vmem [shape: s8[64,2], index: 1, kind: input, shape index: {}]
  %s2 = inlined_call_operand.hbm [shape: f32[8,100], index: 2, kind: output, shape index: {}]
  %s3 = sld [smem:[#allocation0]]
  $region26: #{tpu_custom_call.1} parent=0
    _
  %s5 = ssub.s32 1, %s3
  %s6 = scalar_select 0, %s5, %s3
  $region1: #{tpu_custom_call.1} parent=0
    #allocation2 [shape = 'u8[32768]{0}', space=vmem, size = 0x8000, scoped, tag = 'input window, operand 0, single buffered']
    #allocation3 [shape = 's32[1]{0}', space=sflag, size = 0x4, scoped, tag = 'scoped memory for tpu_custom_call.1']
    #allocation4 [shape = 's32[1]{0}', space=sflag, size = 0x4, scoped, tag = 'scoped memory for tpu_custom_call.1']
    #allocation5 [shape = 'u8[4096]{0}', space=vmem, size = 0x1000, scoped, tag = 'output window, operand 0, single buffered']
    %7 = vsyncpa [#allocation3], 0
    %8 = vsyncpa [#allocation4], 0
    // Predicated region
    $region2: #{tpu_custom_call.1} parent=1 // pred_check
      _
    $region3: #{tpu_custom_call.1} parent=1 // pred_check_branch
      %10 = sbr.rel (0) target = $region5
    $region4: #{tpu_custom_call.1} parent=1 // pred_region
      %s11 = sadd.s32 0, 0
      %s12 = smul.u32 8, %s11
      %s14 = ssub.s32 1024, 1024
      %15 = vsyncadd [#allocation3], %s14
      %s16 = smul.addr %s12, 128
      %s17 = scalar_lea.hbm %s0, %s16
      %s18 = sshll.u32 [#allocation2], 4
      %s19 = int_to_ptr.vmem [resolvable:$true] %s18
      %24 = dma.hbm_to_vmem [thread:$0]  %s17, 1024, %s19, [#allocation3], 128, 128, 8
    $region5: #{tpu_custom_call.1} parent=1 // pred_fallthru
      _
    // Predicated region
    $region6: #{tpu_custom_call.1} parent=1 // pred_check
      _
    $region7: #{tpu_custom_call.1} parent=1 // pred_check_branch
      %26 = sbr.rel (0) target = $region9
    $region8: #{tpu_custom_call.1} parent=1 // pred_region
      %s27 = sadd.s32 0, 0
      %s28 = smul.u32 8, %s27
      %p29 = scmp.lt.s32.totalorder %s28, 7
      %s30 = scalar_select %p29, %s28, 7
      %s31 = smul.addr %s30, 2
      %s32 = scalar_lea.vmem %s1, %s31
      %s33 = sadd.s32 0, 0
      %s34 = smul.u32 8, %s33
    $region9: #{tpu_custom_call.1} parent=1 // pred_fallthru
      _
    // Predicated region
    $region10: #{tpu_custom_call.1} parent=1 // pred_check
      _
    $region11: #{tpu_custom_call.1} parent=1 // pred_check_branch
      %36 = sbr.rel (0) target = $region13
    $region12: #{tpu_custom_call.1} parent=1 // pred_region
      %37 = dma.done [#allocation3], 1024
    $region13: #{tpu_custom_call.1} parent=1 // pred_fallthru
      _
    %s38 = sadd.s32 0, 0
    %s39 = smul.u32 8, %s38
    %p40 = scmp.lt.s32.totalorder %s39, 7
    %s41 = scalar_select %p40, %s39, 7
    %s42 = smul.addr %s41, 2
    %s43 = scalar_lea.vmem %s1, %s42
    %s44 = sadd.s32 0, 0
    %s45 = smul.u32 8, %s44
    %s46 = sadd.s32 0, 0
    %s47 = smul.u32 8, %s46
    %p48 = scmp.lt.s32.totalorder %s47, 7
    %s49 = scalar_select %p48, %s47, 7
    %s50 = smul.addr %s49, 2
    %s51 = scalar_lea.vmem %s1, %s50
    %s52 = sadd.s32 0, 0
    %s53 = smul.u32 8, %s52
    %p54 = scmp.eq.s32.totalorder 0, 0
    // Predicated region
    $region14: #{tpu_custom_call.1} parent=1 // pred_check
      %p55 = pneg %p54
    $region15: #{tpu_custom_call.1} parent=1 // pred_check_branch
      %57 = sbr.rel (%p55) target = $region17
    $region16: #{tpu_custom_call.1} parent=1 // pred_region
      %vm58 = vcmask 818176
      %59 = vst.msk [vmem:[#allocation5] sm:$0xff] %vm58, 0.0
    $region17: #{tpu_custom_call.1} parent=1 // pred_fallthru
      _
    %v60 = vld [vmem:[#allocation2] sm:$0xff]
    %v61 = vld [vmem:[#allocation2 + $0x8] sm:$0xff]
    %v62 = vld [vmem:[#allocation2 + $0x10] sm:$0xff]
    %v63 = vld [vmem:[#allocation2 + $0x18] sm:$0xff]
    %v64 = vld [vmem:[#allocation2 + $0x20] sm:$0xff]
    %v65 = vld [vmem:[#allocation2 + $0x28] sm:$0xff]
    %v66 = vld [vmem:[#allocation2 + $0x30] sm:$0xff]
    %v67 = vld [vmem:[#allocation2 + $0x38] sm:$0xff]
    %v68 = vld [vmem:[%s51] sm:$0x3]
    %v69 = vld [vmem:[%s51 + $0x2] sm:$0x3]
    %v70 = vld [vmem:[%s51 + $0x4] sm:$0x3]
    %v71 = vld [vmem:[%s51 + $0x6] sm:$0x3]
    %v72 = vld [vmem:[%s51 + $0x8] sm:$0x3]
    %v73 = vld [vmem:[%s51 + $0xa] sm:$0x3]
    %v74 = vld [vmem:[%s51 + $0xc] sm:$0x3]
    %v75 = vld [vmem:[%s51 + $0xe] sm:$0x3]
    %v76 = vunpack.c.0.s8 %v68
    %v77 = vunpack.c.0.s8 %v69
    %v78 = vunpack.c.0.s8 %v70
    %v79 = vunpack.c.0.s8 %v71
    %v80 = vunpack.c.0.s8 %v72
    %v81 = vunpack.c.0.s8 %v73
    %v82 = vunpack.c.0.s8 %v74
    %v83 = vunpack.c.0.s8 %v75
    %v84 = vlaneseq
    %v85 = vand.u32 %v84, 127
    %86 = vset.pattern.permute.xlu0 0
    %87 = vperm.xlu0 %86, %v76
    %v88 = vpop.permute.xlu0 %87
    %89 = vset.pattern.permute.xlu0 0
    %90 = vperm.xlu0 %89, %v77
    %v91 = vpop.permute.xlu0 %90
    %92 = vset.pattern.permute.xlu0 0
    %93 = vperm.xlu0 %92, %v78
    %v94 = vpop.permute.xlu0 %93
    %95 = vset.pattern.permute.xlu0 0
    %96 = vperm.xlu0 %95, %v79
    %v97 = vpop.permute.xlu0 %96
    %98 = vset.pattern.permute.xlu0 0
    %99 = vperm.xlu0 %98, %v80
    %v100 = vpop.permute.xlu0 %99
    %101 = vset.pattern.permute.xlu0 0
    %102 = vperm.xlu0 %101, %v81
    %v103 = vpop.permute.xlu0 %102
    %104 = vset.pattern.permute.xlu0 0
    %105 = vperm.xlu0 %104, %v82
    %v106 = vpop.permute.xlu0 %105
    %107 = vset.pattern.permute.xlu0 0
    %108 = vperm.xlu0 %107, %v83
    %v109 = vpop.permute.xlu0 %108
    %vm110 = vcmp.eq.s32.totalorder %v85, %v88
    %vm111 = vcmp.eq.s32.totalorder %v85, %v91
    %vm112 = vcmp.eq.s32.totalorder %v85, %v94
    %vm113 = vcmp.eq.s32.totalorder %v85, %v97
    %vm114 = vcmp.eq.s32.totalorder %v85, %v100
    %vm115 = vcmp.eq.s32.totalorder %v85, %v103
    %vm116 = vcmp.eq.s32.totalorder %v85, %v106
    %vm117 = vcmp.eq.s32.totalorder %v85, %v109
    %118 = vset.pattern.permute.xlu0 1
    %119 = vperm.xlu0 %118, %v76
    %v120 = vpop.permute.xlu0 %119
    %121 = vset.pattern.permute.xlu0 1
    %122 = vperm.xlu0 %121, %v77
    %v123 = vpop.permute.xlu0 %122
    %124 = vset.pattern.permute.xlu0 1
    %125 = vperm.xlu0 %124, %v78
    %v126 = vpop.permute.xlu0 %125
    %127 = vset.pattern.permute.xlu0 1
    %128 = vperm.xlu0 %127, %v79
    %v129 = vpop.permute.xlu0 %128
    %130 = vset.pattern.permute.xlu0 1
    %131 = vperm.xlu0 %130, %v80
    %v132 = vpop.permute.xlu0 %131
    %133 = vset.pattern.permute.xlu0 1
    %134 = vperm.xlu0 %133, %v81
    %v135 = vpop.permute.xlu0 %134
    %136 = vset.pattern.permute.xlu0 1
    %137 = vperm.xlu0 %136, %v82
    %v138 = vpop.permute.xlu0 %137
    %139 = vset.pattern.permute.xlu0 1
    %140 = vperm.xlu0 %139, %v83
    %v141 = vpop.permute.xlu0 %140
    %vm142 = vcmp.eq.s32.totalorder %v85, %v120
    %vm143 = vcmp.eq.s32.totalorder %v85, %v123
    %vm144 = vcmp.eq.s32.totalorder %v85, %v126
    %vm145 = vcmp.eq.s32.totalorder %v85, %v129
    %vm146 = vcmp.eq.s32.totalorder %v85, %v132
    %vm147 = vcmp.eq.s32.totalorder %v85, %v135
    %vm148 = vcmp.eq.s32.totalorder %v85, %v138
    %vm149 = vcmp.eq.s32.totalorder %v85, %v141
    %vm150 = vmor %vm110, %vm142
    %vm151 = vmor %vm111, %vm143
    %vm152 = vmor %vm112, %vm144
    %vm153 = vmor %vm113, %vm145
    %vm154 = vmor %vm114, %vm146
    %vm155 = vmor %vm115, %vm147
    %vm156 = vmor %vm116, %vm148
    %vm157 = vmor %vm117, %vm149
    %v158 = vsel %vm150, %v60, 0.0
    %v159 = vsel %vm151, %v61, 0.0
    %v160 = vsel %vm152, %v62, 0.0
    %v161 = vsel %vm153, %v63, 0.0
    %v162 = vsel %vm154, %v64, 0.0
    %v163 = vsel %vm155, %v65, 0.0
    %v164 = vsel %vm156, %v66, 0.0
    %v165 = vsel %vm157, %v67, 0.0
    %v166 = vld [vmem:[#allocation5] sm:$0x1]
    %vm167 = vcmask 818176
    %v168 = vsel %vm167, %v158, 0.0
    %v169 = vsel %vm167, %v159, 0.0
    %v170 = vadd.f32 %v168, %v169
    %v171 = vsel %vm167, %v160, 0.0
    %v172 = vadd.f32 %v170, %v171
    %v173 = vsel %vm167, %v161, 0.0
    %v174 = vadd.f32 %v172, %v173
    %v175 = vsel %vm167, %v162, 0.0
    %v176 = vadd.f32 %v174, %v175
    %v177 = vsel %vm167, %v163, 0.0
    %v178 = vadd.f32 %v176, %v177
    %v179 = vsel %vm167, %v164, 0.0
    %v180 = vadd.f32 %v178, %v179
    %v181 = vsel %vm167, %v165, 0.0
    %v182 = vadd.f32 %v180, %v181
    %v183 = vrot.slane %v182, 4
    %v184 = vadd.f32 %v182, %v183
    %v185 = vrot.slane %v184, 2
    %v186 = vadd.f32 %v184, %v185
    %v187 = vrot.slane %v186, 1
    %v188 = vadd.f32 %v186, %v187
    %v189 = vadd.f32 %v166, %v188
    %vm190 = vcmask 811008
    %191 = vst.msk [vmem:[#allocation5] sm:$0x1] %vm190, %v189
    // Predicated region
    $region18: #{tpu_custom_call.1} parent=1 // pred_check
      _
    $region19: #{tpu_custom_call.1} parent=1 // pred_check_branch
      %193 = sbr.rel (0) target = $region21
    $region20: #{tpu_custom_call.1} parent=1 // pred_region
      %s195 = ssub.s32 128, 128
      %196 = vsyncadd [#allocation4], %s195
      %s198 = sshll.u32 [#allocation5], 4
      %s199 = int_to_ptr.vmem [resolvable:$true] %s198
      %201 = dma.vmem_to_hbm [thread:$0]  %s199, 128, %s2, [#allocation4]
    $region21: #{tpu_custom_call.1} parent=1 // pred_fallthru
      _
    // Predicated region
    $region22: #{tpu_custom_call.1} parent=1 // pred_check
      _
    $region23: #{tpu_custom_call.1} parent=1 // pred_check_branch
      %203 = sbr.rel (0) target = $region25
    $region24: #{tpu_custom_call.1} parent=1 // pred_region
      %204 = dma.done [#allocation4], 128
    $region25: #{tpu_custom_call.1} parent=1 // pred_fallthru
      _
    %205 = vsyncpa [#allocation3], 1
    %206 = vsyncpa [#allocation4], 1

</llo_original>
